<compile_context>
chip_gen: v6e
topology: v6e:2x2x1
jax: 0.10.0
libtpu: 0.0.40
codegen_flags: <defaults>
</compile_context>

<pallas_src>
import functools

import jax
import jax.numpy as jnp
from jax.experimental import pallas as pl
from jax.experimental.pallas import tpu as pltpu


def _eca_kernel(w_ref, x_ref, o_ref, *, k_size):
    # w_ref: (k_size,) f32 Conv1d taps, resident in SMEM (read as scalars).
    # x_ref: (B_TILE, C, HW) input block in VMEM.
    # o_ref: (B_TILE, C, HW) output block in VMEM.
    hw = x_ref.shape[-1]
    c = x_ref.shape[1]
    pad = (k_size - 1) // 2

    # Global average pool over the flattened spatial (lane) axis with f32
    # accumulation — no full-precision shadow copy of the tile.
    m = jnp.sum(x_ref[...], axis=-1, keepdims=True, dtype=jnp.float32) * (1.0 / hw)
    # m: (B_TILE, C, 1)

    # Channel-wise 1-D conv with zero padding == k shifted adds along the
    # channel (sublane) axis.  Replaces the old (C, C) banded matmul.
    if pad > 0:
        z = jnp.zeros((m.shape[0], pad, 1), jnp.float32)
        mp = jnp.concatenate([z, m, z], axis=1)          # (B_TILE, C + 2*pad, 1)
    else:
        mp = m
    conv = w_ref[0] * jax.lax.slice_in_dim(mp, 0, c, axis=1)
    for t in range(1, k_size):
        conv = conv + w_ref[t] * jax.lax.slice_in_dim(mp, t, t + c, axis=1)

    scale = jax.nn.sigmoid(conv)                         # (B_TILE, C, 1), f32

    # Gate in the input dtype; (B_TILE, C, 1) broadcasts over the lane (HW) axis.
    o_ref[...] = (x_ref[...] * scale.astype(o_ref.dtype)).astype(o_ref.dtype)


def _pick_batch_tile(n, c, hw, itemsize, block_budget_bytes):
    """Largest divisor of n whose in+out, double-buffered block fits the budget."""
    per_batch = 2 * 2 * c * hw * itemsize          # (in + out) x double-buffered
    bt = int(max(1, min(n, block_budget_bytes // max(per_batch, 1))))
    while n % bt:
        bt -= 1
    return bt


def eca_forward(x, conv_w, k_size=3):
    """x: (N, C, H, W) NCHW; conv_w: (1, 1, k_size) Conv1d weight (no bias)."""
    N, C, H, W = x.shape
    HW = H * W
    itemsize = jnp.dtype(x.dtype).itemsize

    # ~16 MiB of block data (in+out, double-buffered) keeps us well inside the
    # 32 MiB scoped VMEM limit we request below on every TPU generation.
    # TODO(synk): for very large C*HW on v7x (64 MiB VMEM), add a two-pass
    # HW-tiled fallback (tiled reduce -> tiled gating) instead of B_TILE=1.
    b_tile = _pick_batch_tile(N, C, HW, itemsize, 16 * 1024 * 1024)
    grid = (N // b_tile,)

    # TODO(synk): for real ECA placements with HW < 128 (e.g. 7x7 maps), a
    # lane-dense (N, HW, C) layout would avoid masked partial stores.
    x2 = x.reshape(N, C, HW)
    w = conv_w.reshape(k_size).astype(jnp.float32)

    kernel = functools.partial(_eca_kernel, k_size=k_size)

    cost = pl.CostEstimate(
        flops=int(2 * N * C * HW + 2 * k_size * N * C),
        transcendentals=int(N * C),
        bytes_accessed=int(2 * N * C * HW * itemsize + k_size * 4),
    )

    out = pl.pallas_call(
        kernel,
        out_shape=jax.ShapeDtypeStruct((N, C, HW), x.dtype),
        grid_spec=pltpu.PrefetchScalarGridSpec(
            num_scalar_prefetch=0,
            grid=grid,
            in_specs=[
                # Conv taps: tiny scalar array, lives in SMEM.
                pl.BlockSpec(memory_space=pltpu.MemorySpace.SMEM),
                # Multi-batch data block; (C, HW) are full dims so the (8,128)
                # constraint is satisfied for any C/HW.
                pl.BlockSpec((b_tile, C, HW), lambda b: (b, 0, 0)),
            ],
            out_specs=pl.BlockSpec((b_tile, C, HW), lambda b: (b, 0, 0)),
        ),
        compiler_params=pltpu.CompilerParams(
            dimension_semantics=("parallel",),
            vmem_limit_bytes=32 * 1024 * 1024,
        ),
        cost_estimate=cost,
    )(w, x2)

    return out.reshape(N, C, H, W)


def eca_reference(x, conv_w, k_size=3):
    """Pure-JAX reference mirroring the PyTorch forward."""
    N, C, H, W = x.shape
    pad = (k_size - 1) // 2
    w = conv_w.reshape(k_size).astype(jnp.float32)
    y = jnp.mean(x.astype(jnp.float32), axis=(2, 3))        # (N, C)
    yp = jnp.pad(y, ((0, 0), (pad, pad)))
    conv = sum(w[t] * yp[:, t:t + C] for t in range(k_size))
    s = jax.nn.sigmoid(conv)[:, :, None, None]
    return (x * s).astype(x.dtype)


if __name__ == "__main__":
    key = jax.random.PRNGKey(0)
    kx, kw = jax.random.split(key)

    N, C, H, W = 2, 8, 16, 16
    k_size = 3

    x = jax.random.normal(kx, (N, C, H, W), dtype=jnp.float32)
    # Deterministic Conv1d weight init (uniform in [-1/sqrt(k), 1/sqrt(k)],
    # matching PyTorch's default fan-in bound for Conv1d(1, 1, k)).
    bound = 1.0 / (k_size ** 0.5)
    conv_w = jax.random.uniform(kw, (1, 1, k_size), minval=-bound, maxval=bound,
                                dtype=jnp.float32)

    out = eca_forward(x, conv_w, k_size=k_size)
    out = jax.block_until_ready(out)

    ref = eca_reference(x, conv_w, k_size=k_size)
    assert out.shape == x.shape and out.dtype == x.dtype
    assert jnp.allclose(out, ref, atol=1e-5, rtol=1e-5), "mismatch vs reference"

    print("KERNEL_OK")
</pallas_src>

<mosaic_0001>
module attributes {stable_mosaic.version = 11 : i64} {
  func.func @_eca_kernel(%arg0: i32, %arg1: memref<3xf32, #tpu.memory_space<smem>>, %arg2: memref<2x8x256xf32, #tpu.memory_space<vmem>>, %arg3: memref<2x8x256xf32, #tpu.memory_space<vmem>>) attributes {dimension_semantics = [#tpu.dimension_semantics<parallel>], iteration_bounds = array<i64: 1>, scalar_prefetch = 0 : i64, scratch_operands = 0 : i64, tpu.core_type = #tpu.core_type<tc>, window_params = [{transform_indices = @transform_0, window_bounds = array<i64: 3>}, {transform_indices = @transform_1, window_bounds = array<i64: 2, 8, 256>}, {transform_indices = @transform_2, window_bounds = array<i64: 2, 8, 256>}]} {
    %c0 = arith.constant 0 : index
    %c0_0 = arith.constant 0 : index
    %c0_1 = arith.constant 0 : index
    %0 = vector.load %arg2[%c0, %c0_0, %c0_1] : memref<2x8x256xf32, #tpu.memory_space<vmem>>, vector<2x8x256xf32>
    %cst = arith.constant dense<0.000000e+00> : vector<2x8xf32>
    %1 = vector.multi_reduction <add>, %0, %cst [2] : vector<2x8x256xf32> to vector<2x8xf32>
    %2 = vector.shape_cast %1 : vector<2x8xf32> to vector<2x8x1xf32>
    %cst_2 = arith.constant 3.906250e-03 : f32
    %3 = vector.broadcast %cst_2 : f32 to vector<2x8x1xf32>
    %4 = arith.mulf %2, %3 : vector<2x8x1xf32>
    %cst_3 = arith.constant 0.000000e+00 : f32
    %5 = vector.broadcast %cst_3 : f32 to vector<2x1x1xf32>
    %6 = tpu.concatenate %5, %4, %5 in 1 : vector<2x1x1xf32>, vector<2x8x1xf32>, vector<2x1x1xf32> -> vector<2x10x1xf32>
    %c0_4 = arith.constant 0 : index
    %7 = memref.load %arg1[%c0_4] : memref<3xf32, #tpu.memory_space<smem>>
    %8 = vector.extract_strided_slice %6 {offsets = [0, 0, 0], sizes = [2, 8, 1], strides = [1, 1, 1]} : vector<2x10x1xf32> to vector<2x8x1xf32>
    %9 = vector.broadcast %7 : f32 to vector<2x8x1xf32>
    %10 = arith.mulf %9, %8 : vector<2x8x1xf32>
    %c1 = arith.constant 1 : index
    %11 = memref.load %arg1[%c1] : memref<3xf32, #tpu.memory_space<smem>>
    %12 = vector.extract_strided_slice %6 {offsets = [0, 1, 0], sizes = [2, 8, 1], strides = [1, 1, 1]} : vector<2x10x1xf32> to vector<2x8x1xf32>
    %13 = vector.broadcast %11 : f32 to vector<2x8x1xf32>
    %14 = arith.mulf %13, %12 : vector<2x8x1xf32>
    %15 = arith.addf %10, %14 : vector<2x8x1xf32>
    %c2 = arith.constant 2 : index
    %16 = memref.load %arg1[%c2] : memref<3xf32, #tpu.memory_space<smem>>
    %17 = vector.extract_strided_slice %6 {offsets = [0, 2, 0], sizes = [2, 8, 1], strides = [1, 1, 1]} : vector<2x10x1xf32> to vector<2x8x1xf32>
    %18 = vector.broadcast %16 : f32 to vector<2x8x1xf32>
    %19 = arith.mulf %18, %17 : vector<2x8x1xf32>
    %20 = arith.addf %15, %19 : vector<2x8x1xf32>
    %21 = arith.negf %20 : vector<2x8x1xf32>
    %22 = math.exp %21 : vector<2x8x1xf32>
    %cst_5 = arith.constant 1.000000e+00 : f32
    %23 = vector.broadcast %cst_5 : f32 to vector<2x8x1xf32>
    %24 = arith.addf %23, %22 : vector<2x8x1xf32>
    %25 = arith.divf %23, %24 : vector<2x8x1xf32>
    %c0_6 = arith.constant 0 : index
    %c0_7 = arith.constant 0 : index
    %c0_8 = arith.constant 0 : index
    %26 = vector.load %arg2[%c0_6, %c0_7, %c0_8] : memref<2x8x256xf32, #tpu.memory_space<vmem>>, vector<2x8x256xf32>
    %27 = vector.broadcast %25 : vector<2x8x1xf32> to vector<2x8x256xf32>
    %28 = arith.mulf %26, %27 : vector<2x8x256xf32>
    %c0_9 = arith.constant 0 : index
    %c0_10 = arith.constant 0 : index
    %c0_11 = arith.constant 0 : index
    %29 = vector.load %arg3[%c0_9, %c0_10, %c0_11] : memref<2x8x256xf32, #tpu.memory_space<vmem>>, vector<2x8x256xf32>
    tpu.vector_store %arg3[%c0_9, %c0_10, %c0_11], %28 {strides = array<i32>} : memref<2x8x256xf32, #tpu.memory_space<vmem>>, vector<2x8x256xf32>,
    return
  }
  func.func @transform_0(%arg0: i32) -> i32 {
    %c0_i32 = arith.constant 0 : i32
    %c0_i32_0 = arith.constant 0 : i32
    return %c0_i32 : i32
  }
  func.func @transform_1(%arg0: i32) -> (i32, i32, i32) {
    %c0_i32 = arith.constant 0 : i32
    %c0_i32_0 = arith.constant 0 : i32
    %c0_i32_1 = arith.constant 0 : i32
    return %arg0, %c0_i32, %c0_i32_0 : i32, i32, i32
  }
  func.func @transform_2(%arg0: i32) -> (i32, i32, i32) {
    %c0_i32 = arith.constant 0 : i32
    %c0_i32_0 = arith.constant 0 : i32
    %c0_i32_1 = arith.constant 0 : i32
    return %arg0, %c0_i32, %c0_i32_0 : i32, i32, i32
  }
}

</mosaic_0001>

<llo_original>
// kernel: tpu_custom_call.1
$region0: #{tpu_custom_call.1}
  #allocation0 [shape = 'u32[]', space=smem, size = 0x4, offset = 0x4, fixed_abs, tag = 'smem constant byte address 0x4 - core index']
  #allocation1 [shape = 'u32[144,128]{1,0:T(1,128)}', space=vmem, size = 0x12000, scoped, tag = 'internal scratch']
  %s0 = inlined_call_operand.hbm [shape: f32[3], index: 0, kind: input, shape index: {}]
  %s1 = inlined_call_operand.hbm [shape: f32[2,8,256], index: 1, kind: input, shape index: {}]
  %s2 = inlined_call_operand.hbm [shape: f32[2,8,256], index: 2, kind: output, shape index: {}]
  %s3 = sld [smem:[#allocation0]]
  $region26: #{tpu_custom_call.1} parent=0
    _
  %s5 = ssub.s32 1, %s3
  %s6 = scalar_select 0, %s5, %s3
  $region1: #{tpu_custom_call.1} parent=0
    #allocation2 [shape = 'u8[512]{0}', space=smem, size = 0x200, scoped, tag = 'input window, operand 0, single buffered']
    #allocation3 [shape = 's32[1]{0}', space=sflag, size = 0x4, scoped, tag = 'scoped memory for tpu_custom_call.1']
    #allocation4 [shape = 's32[1]{0}', space=sflag, size = 0x4, scoped, tag = 'scoped memory for tpu_custom_call.1']
    #allocation5 [shape = 's32[1]{0}', space=sflag, size = 0x4, scoped, tag = 'scoped memory for tpu_custom_call.1']
    #allocation6 [shape = 'u8[16384]{0}', space=vmem, size = 0x4000, scoped, tag = 'input window, operand 1, single buffered']
    #allocation7 [shape = 'u8[16384]{0}', space=vmem, size = 0x4000, scoped, tag = 'output window, operand 0, single buffered']
    %7 = vsyncpa [#allocation5], 0
    %8 = vsyncpa [#allocation3], 0
    %9 = vsyncpa [#allocation4], 0
    // Predicated region
    $region2: #{tpu_custom_call.1} parent=1 // pred_check
      _
    $region3: #{tpu_custom_call.1} parent=1 // pred_check_branch
      %11 = sbr.rel (0) target = $region5
    $region4: #{tpu_custom_call.1} parent=1 // pred_region
      %s13 = ssub.s32 16, 16
      %14 = vsyncadd [#allocation5], %s13
      %17 = dma.hbm_to_smem %s0, 16, [#allocation2], [#allocation5]
    $region5: #{tpu_custom_call.1} parent=1 // pred_fallthru
      _
    // Predicated region
    $region6: #{tpu_custom_call.1} parent=1 // pred_check
      _
    $region7: #{tpu_custom_call.1} parent=1 // pred_check_branch
      %19 = sbr.rel (0) target = $region9
    $region8: #{tpu_custom_call.1} parent=1 // pred_region
      %s21 = ssub.s32 512, 512
      %22 = vsyncadd [#allocation3], %s21
      %s23 = sshll.u32 [#allocation6], 4
      %s24 = int_to_ptr.vmem [resolvable:$true] %s23
      %29 = dma.hbm_to_vmem [thread:$0]  %s1, 512, %s24, [#allocation3], 256, 256, 16
    $region9: #{tpu_custom_call.1} parent=1 // pred_fallthru
      _
    // Predicated region
    $region10: #{tpu_custom_call.1} parent=1 // pred_check
      _
    $region11: #{tpu_custom_call.1} parent=1 // pred_check_branch
      %31 = sbr.rel (0) target = $region13
    $region12: #{tpu_custom_call.1} parent=1 // pred_region
      %32 = dma.done [#allocation5], 16
    $region13: #{tpu_custom_call.1} parent=1 // pred_fallthru
      _
    // Predicated region
    $region14: #{tpu_custom_call.1} parent=1 // pred_check
      _
    $region15: #{tpu_custom_call.1} parent=1 // pred_check_branch
      %34 = sbr.rel (0) target = $region17
    $region16: #{tpu_custom_call.1} parent=1 // pred_region
      %35 = dma.done [#allocation3], 512
    $region17: #{tpu_custom_call.1} parent=1 // pred_fallthru
      _
    %36 = sfence
    %v37 = vld [vmem:[#allocation6] sm:$0xff]
    %v38 = vld [vmem:[#allocation6 + $0x8] sm:$0xff]
    %v39 = vld [vmem:[#allocation6 + $0x10] sm:$0xff]
    %v40 = vld [vmem:[#allocation6 + $0x18] sm:$0xff]
    %v41 = vadd.f32 %v37, %v38
    %42 = vadd.xlane.f32.xlu0 %v41
    %v43 = vpop.xlane.xlu0 %42
    %v44 = vadd.f32 %v39, %v40
    %45 = vadd.xlane.f32.xlu0 %v44
    %v46 = vpop.xlane.xlu0 %45
    %v47 = vmul.f32 %v43, 0.00390625
    %v48 = vmul.f32 %v46, 0.00390625
    %v51 = vrot.slane %v47, 7
    %v52 = vrot.slane %v48, 7
    %vm55 = vcmask 1040384
    %v56 = vsel %vm55, 0.0, %v51
    %v57 = vsel %vm55, 0.0, %v52
    %v58 = vsel %vm55, %v51, 0.0
    %v59 = vsel %vm55, %v52, 0.0
    %s60 = sld [smem:[#allocation2]]
    %v61 = vstv %s60
    %v62 = vmul.f32 %v61, %v56
    %v63 = vmul.f32 %v61, %v57
    %s64 = sld [smem:[#allocation2 + $0x1]]
    %v65 = vstv %s64
    %v66 = vmul.f32 %v65, %v56
    %v67 = vmul.f32 %v65, %v58
    %v68 = vmul.f32 %v65, %v57
    %v69 = vmul.f32 %v65, %v59
    %vm74 = vcmask 1046528
    %v75 = vrot.slane %v66, 1
    %v76 = vrot.slane %v67, 1
    %v77 = vsel %vm74, %v75, %v76
    %v78 = vrot.slane %v68, 1
    %v79 = vrot.slane %v69, 1
    %v80 = vsel %vm74, %v78, %v79
    %v83 = vadd.f32 %v62, %v77
    %v84 = vadd.f32 %v63, %v80
    %s85 = sld [smem:[#allocation2 + $0x2]]
    %v86 = vstv %s85
    %v87 = vmul.f32 %v86, %v56
    %v88 = vmul.f32 %v86, %v58
    %v89 = vmul.f32 %v86, %v57
    %v90 = vmul.f32 %v86, %v59
    %vm95 = vcmask 1045504
    %v96 = vrot.slane %v87, 2
    %v97 = vrot.slane %v88, 2
    %v98 = vsel %vm95, %v96, %v97
    %v99 = vrot.slane %v89, 2
    %v100 = vrot.slane %v90, 2
    %v101 = vsel %vm95, %v99, %v100
    %v104 = vadd.f32 %v83, %v98
    %v105 = vadd.f32 %v84, %v101
    %v106 = vxor.u32 %v104, 2147483648
    %v107 = vxor.u32 %v105, 2147483648
    %v108 = vmul.f32 %v106, 1.442695
    %v109 = vpow.pop %v108
    %v110 = vmul.f32 %v107, 1.442695
    %v111 = vpow.pop %v110
    %v112 = vadd.f32 %v109, 1.0
    %v113 = vadd.f32 %v111, 1.0
    %v114 = vrcp.pop %v112
    %v115 = vmul.f32 1.0, %v114
    %v116 = vrcp.pop %v113
    %v117 = vmul.f32 1.0, %v116
    %119 = vset.pattern.permute.xlu0 0
    %120 = vperm.xlu0 %119, %v115
    %v121 = vpop.permute.xlu0 %120
    %124 = vset.pattern.permute.xlu0 0
    %125 = vperm.xlu0 %124, %v117
    %v126 = vpop.permute.xlu0 %125
    %v128 = vmul.f32 %v37, %v121
    %v129 = vmul.f32 %v38, %v121
    %v130 = vmul.f32 %v39, %v126
    %v131 = vmul.f32 %v40, %v126
    %132 = vst [vmem:[#allocation7] sm:$0xff] %v128
    %133 = vst [vmem:[#allocation7 + $0x8] sm:$0xff] %v129
    %134 = vst [vmem:[#allocation7 + $0x10] sm:$0xff] %v130
    %135 = vst [vmem:[#allocation7 + $0x18] sm:$0xff] %v131
    // Predicated region
    $region18: #{tpu_custom_call.1} parent=1 // pred_check
      _
    $region19: #{tpu_custom_call.1} parent=1 // pred_check_branch
      %137 = sbr.rel (0) target = $region21
    $region20: #{tpu_custom_call.1} parent=1 // pred_region
      %s139 = ssub.s32 512, 512
      %140 = vsyncadd [#allocation4], %s139
      %s141 = sshll.u32 [#allocation7], 4
      %s142 = int_to_ptr.vmem [resolvable:$true] %s141
      %147 = dma.vmem_to_hbm [thread:$0]  %s142, 512, %s2, [#allocation4], 256, 256, 16
    $region21: #{tpu_custom_call.1} parent=1 // pred_fallthru
      _
    // Predicated region
    $region22: #{tpu_custom_call.1} parent=1 // pred_check
      _
    $region23: #{tpu_custom_call.1} parent=1 // pred_check_branch
      %149 = sbr.rel (0) target = $region25
    $region24: #{tpu_custom_call.1} parent=1 // pred_region
      %150 = dma.done [#allocation4], 512
    $region25: #{tpu_custom_call.1} parent=1 // pred_fallthru
      _
    %151 = vsyncpa [#allocation3], 1
    %152 = vsyncpa [#allocation4], 1
    %153 = vsyncpa [#allocation5], 1

</llo_original>
